<compile_context>
chip_gen: v6e
topology: v6e:2x2x1
jax: 0.10.0
libtpu: 0.0.40
codegen_flags: <defaults>
</compile_context>

<pallas_src>
import jax
import jax.numpy as jnp
from jax import lax
from jax.experimental import pallas as pl
from jax.experimental.pallas import tpu as pltpu

# ----------------------------- problem sizes -------------------------------
N_NODES   = 256        # number of graph nodes (src == dst node set)
H_FEATS   = 32         # h_feats
N_AGGS    = 4          # mean, max, min, std  -> concat width = 128
TILE_ND   = 128        # dst-node tile per grid step (lane-dense)
SRC_CHUNK = 8          # source nodes processed per running-reduction step


# ------------------------- fused PrincipalAggregate -------------------------
def _principal_aggregate_kernel(x_ref, xcat_t_ref, adj_t_ref, w_t_ref, b_ref, o_ref):
    ns, f = x_ref.shape               # (Ns, F)
    tile = adj_t_ref.shape[1]         # dst tile width (lanes)

    # ---- mean, mean(x^2) and degree from ONE wide MXU matmul (transposed) ----
    # xcat_t = [x^T ; (x*x)^T ; 1] is (2F+1, Ns); adj_t is (Ns, TILE_dst).
    sums_t = jnp.dot(xcat_t_ref[...], adj_t_ref[...],
                     preferred_element_type=jnp.float32)          # (2F+1, TILE)
    deg_t = sums_t[2 * f:2 * f + 1, :]                            # (1, TILE)
    has_nbr = deg_t > 0.0
    inv_deg = jnp.where(
        has_nbr, pl.reciprocal(jnp.maximum(deg_t, 1.0), approx=True), 0.0)
    mean_t  = sums_t[:f, :] * inv_deg                             # (F, TILE)
    mean2_t = sums_t[f:2 * f, :] * inv_deg                        # (F, TILE)
    # std = sqrt(relu(E[x^2] - E[x]^2) + 1e-5)
    std_t = jnp.sqrt(jnp.maximum(mean2_t - mean_t * mean_t, 0.0) + 1e-5)

    # ---- running masked max / min over source nodes (2-D temps only) ----
    big = jnp.float32(1e30)
    mx0 = jnp.full((f, tile), -big, jnp.float32)
    mn0 = jnp.full((f, tile),  big, jnp.float32)

    def body(c, carry):
        mx_t, mn_t = carry
        base = pl.multiple_of(c * SRC_CHUNK, SRC_CHUNK)
        a8  = adj_t_ref[pl.ds(base, SRC_CHUNK), :]        # (8, TILE) sublane-dyn load
        x8t = x_ref[pl.ds(base, SRC_CHUNK), :].T          # (F, 8) one tiny transpose / 8 srcs
        for jj in range(SRC_CHUNK):                       # static unroll
            m = a8[jj:jj + 1, :] > 0.0                    # (1, TILE)
            v = x8t[:, jj:jj + 1]                         # (F, 1)
            mx_t = jnp.where(m, jnp.maximum(mx_t, v), mx_t)
            mn_t = jnp.where(m, jnp.minimum(mn_t, v), mn_t)
        return mx_t, mn_t

    mx_t, mn_t = lax.fori_loop(0, ns // SRC_CHUNK, body, (mx0, mn0))
    # DGL zero-fill for isolated destinations (std keeps sqrt(1e-5), per module formula)
    mx_t = jnp.where(has_nbr, mx_t, 0.0)
    mn_t = jnp.where(has_nbr, mn_t, 0.0)

    # ---- concat along sublanes (8-aligned -> free) + Linear + ReLU ----
    h_t = jnp.concatenate([mean_t, mx_t, mn_t, std_t], axis=0)    # (4F, TILE)
    out_t = jnp.dot(w_t_ref[...], h_t,
                    preferred_element_type=jnp.float32) + b_ref[...]
    o_ref[...] = jnp.maximum(out_t, 0.0)                          # (F_out, TILE)


def principal_aggregate(x, adj, w, b, *, tile_nd=TILE_ND):
    """x: (Ns, F) features; adj: (Nd, Ns) dense {0,1} MFG; w: (4F, F_out); b: (F_out,)."""
    ns, f = x.shape
    nd = adj.shape[0]
    n_in, f_out = w.shape
    assert nd % tile_nd == 0 and ns % SRC_CHUNK == 0 and n_in == N_AGGS * f

    # Host-side layout prep (tiny): transposed operands so the kernel is lane-dense.
    xcat_t = jnp.concatenate([x.T, (x * x).T, jnp.ones((1, ns), x.dtype)], axis=0)  # (2F+1, Ns)
    adj_t = adj.T                                                                   # (Ns, Nd)
    w_t = w.T                                                                       # (F_out, 4F)
    b_col = b.reshape(f_out, 1)

    out_t = pl.pallas_call(
        _principal_aggregate_kernel,
        out_shape=jax.ShapeDtypeStruct((f_out, nd), jnp.float32),
        grid=(nd // tile_nd,),
        in_specs=[
            pl.BlockSpec((ns, f),          lambda i: (0, 0)),   # x         (resident)
            pl.BlockSpec((2 * f + 1, ns),  lambda i: (0, 0)),   # [x|x^2|1]^T (resident)
            pl.BlockSpec((ns, tile_nd),    lambda i: (0, i)),   # adj^T, dst-tiled
            pl.BlockSpec((f_out, n_in),    lambda i: (0, 0)),   # W^T       (resident)
            pl.BlockSpec((f_out, 1),       lambda i: (0, 0)),   # bias column
        ],
        out_specs=pl.BlockSpec((f_out, tile_nd), lambda i: (0, i)),
        compiler_params=pltpu.CompilerParams(
            dimension_semantics=("parallel",)),                 # 2nd TC on v7x
    )(x, xcat_t, adj_t, w_t, b_col)
    return out_t.T                                              # (Nd, F_out)


# ------------------------- pure-JAX reference (check) -----------------------
def principal_aggregate_ref(x, adj, w, b):
    deg = adj.sum(-1, keepdims=True)
    has = deg > 0.0
    inv = jnp.where(has, 1.0 / jnp.maximum(deg, 1.0), 0.0)
    mean_x  = (adj @ x) * inv
    mean_x2 = (adj @ (x * x)) * inv
    std = jnp.sqrt(jnp.maximum(mean_x2 - mean_x ** 2, 0.0) + 1e-5)
    mask = adj[:, :, None] > 0.0
    xb = x[None, :, :]
    mx = jnp.where(has, jnp.max(jnp.where(mask, xb, -1e30), axis=1), 0.0)
    mn = jnp.where(has, jnp.min(jnp.where(mask, xb,  1e30), axis=1), 0.0)
    h = jnp.concatenate([mean_x, mx, mn, std], axis=1)
    return jnp.maximum(h @ w + b, 0.0)


# --------------------------------- main --------------------------------------
if __name__ == "__main__":
    key = jax.random.PRNGKey(0)
    k_feat, k_adj, k_w, k_b = jax.random.split(key, 4)

    # deterministic synthetic dense message-flow-graph (self-loops -> deg >= 1)
    feat = jax.random.normal(k_feat, (N_NODES, H_FEATS), jnp.float32)
    adj = jax.random.bernoulli(k_adj, 0.1, (N_NODES, N_NODES)).astype(jnp.float32)
    adj = jnp.clip(adj + jnp.eye(N_NODES, dtype=jnp.float32), 0.0, 1.0)
    adj = adj.at[0, :].set(0.0)      # make node 0 isolated: exercise zero-in-degree path

    # Linear(4*h_feats -> h_feats) parameters, stored (in, out).
    w = 0.1 * jax.random.normal(k_w, (N_AGGS * H_FEATS, H_FEATS), jnp.float32)
    b = 0.1 * jax.random.normal(k_b, (H_FEATS,), jnp.float32)

    out = jax.jit(principal_aggregate)(feat, adj, w, b)
    out = jax.block_until_ready(out)

    ref = principal_aggregate_ref(feat, adj, w, b)
    assert out.shape == (N_NODES, H_FEATS)
    # tolerance accounts for pl.reciprocal(approx=True) on 1/deg
    assert jnp.allclose(out, ref, rtol=5e-3, atol=5e-3), "mismatch vs reference"

    print("KERNEL_OK")
</pallas_src>

<mosaic_0001>
module attributes {stable_mosaic.version = 11 : i64} {
  func.func @_principal_aggregate_kernel(%arg0: i32, %arg1: memref<256x32xf32, #tpu.memory_space<vmem>>, %arg2: memref<65x256xf32, #tpu.memory_space<vmem>>, %arg3: memref<256x128xf32, #tpu.memory_space<vmem>>, %arg4: memref<32x128xf32, #tpu.memory_space<vmem>>, %arg5: memref<32x1xf32, #tpu.memory_space<vmem>>, %arg6: memref<32x128xf32, #tpu.memory_space<vmem>>) attributes {dimension_semantics = [#tpu.dimension_semantics<parallel>], iteration_bounds = array<i64: 2>, scalar_prefetch = 0 : i64, scratch_operands = 0 : i64, tpu.core_type = #tpu.core_type<tc>, window_params = [{pipeline_mode = #tpu.pipeline_mode<synchronous>, transform_indices = @transform_0, window_bounds = array<i64: 256, 32>}, {pipeline_mode = #tpu.pipeline_mode<synchronous>, transform_indices = @transform_1, window_bounds = array<i64: 65, 256>}, {transform_indices = @transform_2, window_bounds = array<i64: 256, 128>}, {pipeline_mode = #tpu.pipeline_mode<synchronous>, transform_indices = @transform_3, window_bounds = array<i64: 32, 128>}, {pipeline_mode = #tpu.pipeline_mode<synchronous>, transform_indices = @transform_4, window_bounds = array<i64: 32, 1>}, {transform_indices = @transform_5, window_bounds = array<i64: 32, 128>}]} {
    %c0 = arith.constant 0 : index
    %c0_0 = arith.constant 0 : index
    %0 = vector.load %arg2[%c0, %c0_0] : memref<65x256xf32, #tpu.memory_space<vmem>>, vector<65x256xf32>
    %c0_1 = arith.constant 0 : index
    %c0_2 = arith.constant 0 : index
    %1 = vector.load %arg3[%c0_1, %c0_2] : memref<256x128xf32, #tpu.memory_space<vmem>>, vector<256x128xf32>
    %cst = arith.constant dense<0.000000e+00> : vector<65x128xf32>
    %2 = tpu.matmul %0, %1, %cst {dimension_numbers = #tpu.dot_dimension_numbers<[1], [0], [0], [1], [0, 0, 1, 1], [], []>} : vector<65x256xf32>, vector<256x128xf32>, vector<65x128xf32> -> vector<65x128xf32>
    %3 = vector.extract_strided_slice %2 {offsets = [64, 0], sizes = [1, 128], strides = [1, 1]} : vector<65x128xf32> to vector<1x128xf32>
    %cst_3 = arith.constant 0.000000e+00 : f32
    %4 = vector.broadcast %cst_3 : f32 to vector<1x128xf32>
    %5 = arith.cmpf ogt, %3, %4 : vector<1x128xf32>
    %cst_4 = arith.constant 1.000000e+00 : f32
    %6 = vector.broadcast %cst_4 : f32 to vector<1x128xf32>
    %7 = arith.maximumf %3, %6 : vector<1x128xf32>
    %8 = tpu.reciprocal %7 {approx = true} : vector<1x128xf32> -> vector<1x128xf32>
    %cst_5 = arith.constant 0.000000e+00 : f32
    %9 = vector.broadcast %cst_5 : f32 to vector<1x128xf32>
    %10 = arith.select %5, %8, %9 : vector<1x128xi1>, vector<1x128xf32>
    %11 = vector.extract_strided_slice %2 {offsets = [0, 0], sizes = [32, 128], strides = [1, 1]} : vector<65x128xf32> to vector<32x128xf32>
    %12 = vector.broadcast %10 : vector<1x128xf32> to vector<32x128xf32>
    %13 = arith.mulf %11, %12 : vector<32x128xf32>
    %14 = vector.extract_strided_slice %2 {offsets = [32, 0], sizes = [32, 128], strides = [1, 1]} : vector<65x128xf32> to vector<32x128xf32>
    %15 = vector.broadcast %10 : vector<1x128xf32> to vector<32x128xf32>
    %16 = arith.mulf %14, %15 : vector<32x128xf32>
    %17 = arith.mulf %13, %13 : vector<32x128xf32>
    %18 = arith.subf %16, %17 : vector<32x128xf32>
    %cst_6 = arith.constant 0.000000e+00 : f32
    %19 = vector.broadcast %cst_6 : f32 to vector<32x128xf32>
    %20 = arith.maximumf %18, %19 : vector<32x128xf32>
    %cst_7 = arith.constant 9.99999974E-6 : f32
    %21 = vector.broadcast %cst_7 : f32 to vector<32x128xf32>
    %22 = arith.addf %20, %21 : vector<32x128xf32>
    %23 = math.sqrt %22 : vector<32x128xf32>
    %cst_8 = arith.constant 0.000000e+00 : f32
    %cst_9 = arith.constant 1.000000e+30 : f32
    %24 = arith.subf %cst_8, %cst_9 : f32
    %25 = vector.broadcast %24 : f32 to vector<32x128xf32>
    %cst_10 = arith.constant 1.000000e+30 : f32
    %26 = vector.broadcast %cst_10 : f32 to vector<32x128xf32>
    %c0_i32 = arith.constant 0 : i32
    %c32_i32 = arith.constant 32 : i32
    %27 = arith.addi %c0_i32, %c32_i32 : i32
    %c1_i32 = arith.constant 1 : i32
    %28:2 = scf.for %arg7 = %c0_i32 to %27 step %c1_i32 iter_args(%arg8 = %25, %arg9 = %26) -> (vector<32x128xf32>, vector<32x128xf32>)  : i32 {
      %c8_i32 = arith.constant 8 : i32
      %46 = arith.muli %arg7, %c8_i32 : i32
      %47 = tpu.assume_multiple %46, 8 : i32
      %48 = arith.index_cast %47 : i32 to index
      %c0_22 = arith.constant 0 : index
      %49 = vector.load %arg3[%48, %c0_22] : memref<256x128xf32, #tpu.memory_space<vmem>>, vector<8x128xf32>
      %50 = arith.index_cast %47 : i32 to index
      %c0_23 = arith.constant 0 : index
      %51 = vector.load %arg1[%50, %c0_23] : memref<256x32xf32, #tpu.memory_space<vmem>>, vector<8x32xf32>
      %52 = tpu.transpose %51, [1, 0] : vector<8x32xf32> -> vector<32x8xf32>
      %53 = vector.extract_strided_slice %49 {offsets = [0, 0], sizes = [1, 128], strides = [1, 1]} : vector<8x128xf32> to vector<1x128xf32>
      %cst_24 = arith.constant 0.000000e+00 : f32
      %54 = vector.broadcast %cst_24 : f32 to vector<1x128xf32>
      %55 = arith.cmpf ogt, %53, %54 : vector<1x128xf32>
      %56 = vector.extract_strided_slice %52 {offsets = [0, 0], sizes = [32, 1], strides = [1, 1]} : vector<32x8xf32> to vector<32x1xf32>
      %57 = vector.broadcast %56 : vector<32x1xf32> to vector<32x128xf32>
      %58 = arith.maximumf %arg8, %57 : vector<32x128xf32>
      %59 = vector.shape_cast %55 : vector<1x128xi1> to vector<1x128xi1>
      %60 = vector.broadcast %59 : vector<1x128xi1> to vector<32x128xi1>
      %61 = arith.select %60, %58, %arg8 : vector<32x128xi1>, vector<32x128xf32>
      %62 = vector.broadcast %56 : vector<32x1xf32> to vector<32x128xf32>
      %63 = arith.minimumf %arg9, %62 : vector<32x128xf32>
      %64 = vector.shape_cast %55 : vector<1x128xi1> to vector<1x128xi1>
      %65 = vector.broadcast %64 : vector<1x128xi1> to vector<32x128xi1>
      %66 = arith.select %65, %63, %arg9 : vector<32x128xi1>, vector<32x128xf32>
      %67 = vector.extract_strided_slice %49 {offsets = [1, 0], sizes = [1, 128], strides = [1, 1]} : vector<8x128xf32> to vector<1x128xf32>
      %cst_25 = arith.constant 0.000000e+00 : f32
      %68 = vector.broadcast %cst_25 : f32 to vector<1x128xf32>
      %69 = arith.cmpf ogt, %67, %68 : vector<1x128xf32>
      %70 = vector.extract_strided_slice %52 {offsets = [0, 1], sizes = [32, 1], strides = [1, 1]} : vector<32x8xf32> to vector<32x1xf32>
      %71 = vector.broadcast %70 : vector<32x1xf32> to vector<32x128xf32>
      %72 = arith.maximumf %61, %71 : vector<32x128xf32>
      %73 = vector.shape_cast %69 : vector<1x128xi1> to vector<1x128xi1>
      %74 = vector.broadcast %73 : vector<1x128xi1> to vector<32x128xi1>
      %75 = arith.select %74, %72, %61 : vector<32x128xi1>, vector<32x128xf32>
      %76 = vector.broadcast %70 : vector<32x1xf32> to vector<32x128xf32>
      %77 = arith.minimumf %66, %76 : vector<32x128xf32>
      %78 = vector.shape_cast %69 : vector<1x128xi1> to vector<1x128xi1>
      %79 = vector.broadcast %78 : vector<1x128xi1> to vector<32x128xi1>
      %80 = arith.select %79, %77, %66 : vector<32x128xi1>, vector<32x128xf32>
      %81 = vector.extract_strided_slice %49 {offsets = [2, 0], sizes = [1, 128], strides = [1, 1]} : vector<8x128xf32> to vector<1x128xf32>
      %cst_26 = arith.constant 0.000000e+00 : f32
      %82 = vector.broadcast %cst_26 : f32 to vector<1x128xf32>
      %83 = arith.cmpf ogt, %81, %82 : vector<1x128xf32>
      %84 = vector.extract_strided_slice %52 {offsets = [0, 2], sizes = [32, 1], strides = [1, 1]} : vector<32x8xf32> to vector<32x1xf32>
      %85 = vector.broadcast %84 : vector<32x1xf32> to vector<32x128xf32>
      %86 = arith.maximumf %75, %85 : vector<32x128xf32>
      %87 = vector.shape_cast %83 : vector<1x128xi1> to vector<1x128xi1>
      %88 = vector.broadcast %87 : vector<1x128xi1> to vector<32x128xi1>
      %89 = arith.select %88, %86, %75 : vector<32x128xi1>, vector<32x128xf32>
      %90 = vector.broadcast %84 : vector<32x1xf32> to vector<32x128xf32>
      %91 = arith.minimumf %80, %90 : vector<32x128xf32>
      %92 = vector.shape_cast %83 : vector<1x128xi1> to vector<1x128xi1>
      %93 = vector.broadcast %92 : vector<1x128xi1> to vector<32x128xi1>
      %94 = arith.select %93, %91, %80 : vector<32x128xi1>, vector<32x128xf32>
      %95 = vector.extract_strided_slice %49 {offsets = [3, 0], sizes = [1, 128], strides = [1, 1]} : vector<8x128xf32> to vector<1x128xf32>
      %cst_27 = arith.constant 0.000000e+00 : f32
      %96 = vector.broadcast %cst_27 : f32 to vector<1x128xf32>
      %97 = arith.cmpf ogt, %95, %96 : vector<1x128xf32>
      %98 = vector.extract_strided_slice %52 {offsets = [0, 3], sizes = [32, 1], strides = [1, 1]} : vector<32x8xf32> to vector<32x1xf32>
      %99 = vector.broadcast %98 : vector<32x1xf32> to vector<32x128xf32>
      %100 = arith.maximumf %89, %99 : vector<32x128xf32>
      %101 = vector.shape_cast %97 : vector<1x128xi1> to vector<1x128xi1>
      %102 = vector.broadcast %101 : vector<1x128xi1> to vector<32x128xi1>
      %103 = arith.select %102, %100, %89 : vector<32x128xi1>, vector<32x128xf32>
      %104 = vector.broadcast %98 : vector<32x1xf32> to vector<32x128xf32>
      %105 = arith.minimumf %94, %104 : vector<32x128xf32>
      %106 = vector.shape_cast %97 : vector<1x128xi1> to vector<1x128xi1>
      %107 = vector.broadcast %106 : vector<1x128xi1> to vector<32x128xi1>
      %108 = arith.select %107, %105, %94 : vector<32x128xi1>, vector<32x128xf32>
      %109 = vector.extract_strided_slice %49 {offsets = [4, 0], sizes = [1, 128], strides = [1, 1]} : vector<8x128xf32> to vector<1x128xf32>
      %cst_28 = arith.constant 0.000000e+00 : f32
      %110 = vector.broadcast %cst_28 : f32 to vector<1x128xf32>
      %111 = arith.cmpf ogt, %109, %110 : vector<1x128xf32>
      %112 = vector.extract_strided_slice %52 {offsets = [0, 4], sizes = [32, 1], strides = [1, 1]} : vector<32x8xf32> to vector<32x1xf32>
      %113 = vector.broadcast %112 : vector<32x1xf32> to vector<32x128xf32>
      %114 = arith.maximumf %103, %113 : vector<32x128xf32>
      %115 = vector.shape_cast %111 : vector<1x128xi1> to vector<1x128xi1>
      %116 = vector.broadcast %115 : vector<1x128xi1> to vector<32x128xi1>
      %117 = arith.select %116, %114, %103 : vector<32x128xi1>, vector<32x128xf32>
      %118 = vector.broadcast %112 : vector<32x1xf32> to vector<32x128xf32>
      %119 = arith.minimumf %108, %118 : vector<32x128xf32>
      %120 = vector.shape_cast %111 : vector<1x128xi1> to vector<1x128xi1>
      %121 = vector.broadcast %120 : vector<1x128xi1> to vector<32x128xi1>
      %122 = arith.select %121, %119, %108 : vector<32x128xi1>, vector<32x128xf32>
      %123 = vector.extract_strided_slice %49 {offsets = [5, 0], sizes = [1, 128], strides = [1, 1]} : vector<8x128xf32> to vector<1x128xf32>
      %cst_29 = arith.constant 0.000000e+00 : f32
      %124 = vector.broadcast %cst_29 : f32 to vector<1x128xf32>
      %125 = arith.cmpf ogt, %123, %124 : vector<1x128xf32>
      %126 = vector.extract_strided_slice %52 {offsets = [0, 5], sizes = [32, 1], strides = [1, 1]} : vector<32x8xf32> to vector<32x1xf32>
      %127 = vector.broadcast %126 : vector<32x1xf32> to vector<32x128xf32>
      %128 = arith.maximumf %117, %127 : vector<32x128xf32>
      %129 = vector.shape_cast %125 : vector<1x128xi1> to vector<1x128xi1>
      %130 = vector.broadcast %129 : vector<1x128xi1> to vector<32x128xi1>
      %131 = arith.select %130, %128, %117 : vector<32x128xi1>, vector<32x128xf32>
      %132 = vector.broadcast %126 : vector<32x1xf32> to vector<32x128xf32>
      %133 = arith.minimumf %122, %132 : vector<32x128xf32>
      %134 = vector.shape_cast %125 : vector<1x128xi1> to vector<1x128xi1>
      %135 = vector.broadcast %134 : vector<1x128xi1> to vector<32x128xi1>
      %136 = arith.select %135, %133, %122 : vector<32x128xi1>, vector<32x128xf32>
      %137 = vector.extract_strided_slice %49 {offsets = [6, 0], sizes = [1, 128], strides = [1, 1]} : vector<8x128xf32> to vector<1x128xf32>
      %cst_30 = arith.constant 0.000000e+00 : f32
      %138 = vector.broadcast %cst_30 : f32 to vector<1x128xf32>
      %139 = arith.cmpf ogt, %137, %138 : vector<1x128xf32>
      %140 = vector.extract_strided_slice %52 {offsets = [0, 6], sizes = [32, 1], strides = [1, 1]} : vector<32x8xf32> to vector<32x1xf32>
      %141 = vector.broadcast %140 : vector<32x1xf32> to vector<32x128xf32>
      %142 = arith.maximumf %131, %141 : vector<32x128xf32>
      %143 = vector.shape_cast %139 : vector<1x128xi1> to vector<1x128xi1>
      %144 = vector.broadcast %143 : vector<1x128xi1> to vector<32x128xi1>
      %145 = arith.select %144, %142, %131 : vector<32x128xi1>, vector<32x128xf32>
      %146 = vector.broadcast %140 : vector<32x1xf32> to vector<32x128xf32>
      %147 = arith.minimumf %136, %146 : vector<32x128xf32>
      %148 = vector.shape_cast %139 : vector<1x128xi1> to vector<1x128xi1>
      %149 = vector.broadcast %148 : vector<1x128xi1> to vector<32x128xi1>
      %150 = arith.select %149, %147, %136 : vector<32x128xi1>, vector<32x128xf32>
      %151 = vector.extract_strided_slice %49 {offsets = [7, 0], sizes = [1, 128], strides = [1, 1]} : vector<8x128xf32> to vector<1x128xf32>
      %cst_31 = arith.constant 0.000000e+00 : f32
      %152 = vector.broadcast %cst_31 : f32 to vector<1x128xf32>
      %153 = arith.cmpf ogt, %151, %152 : vector<1x128xf32>
      %154 = vector.extract_strided_slice %52 {offsets = [0, 7], sizes = [32, 1], strides = [1, 1]} : vector<32x8xf32> to vector<32x1xf32>
      %155 = vector.broadcast %154 : vector<32x1xf32> to vector<32x128xf32>
      %156 = arith.maximumf %145, %155 : vector<32x128xf32>
      %157 = vector.shape_cast %153 : vector<1x128xi1> to vector<1x128xi1>
      %158 = vector.broadcast %157 : vector<1x128xi1> to vector<32x128xi1>
      %159 = arith.select %158, %156, %145 : vector<32x128xi1>, vector<32x128xf32>
      %160 = vector.broadcast %154 : vector<32x1xf32> to vector<32x128xf32>
      %161 = arith.minimumf %150, %160 : vector<32x128xf32>
      %162 = vector.shape_cast %153 : vector<1x128xi1> to vector<1x128xi1>
      %163 = vector.broadcast %162 : vector<1x128xi1> to vector<32x128xi1>
      %164 = arith.select %163, %161, %150 : vector<32x128xi1>, vector<32x128xf32>
      scf.yield %159, %164 : vector<32x128xf32>, vector<32x128xf32>
    }
    %c32_i32_11 = arith.constant 32 : i32
    %cst_12 = arith.constant 0.000000e+00 : f32
    %29 = vector.shape_cast %5 : vector<1x128xi1> to vector<1x128xi1>
    %30 = vector.broadcast %29 : vector<1x128xi1> to vector<32x128xi1>
    %31 = vector.broadcast %cst_12 : f32 to vector<32x128xf32>
    %32 = arith.select %30, %28#0, %31 : vector<32x128xi1>, vector<32x128xf32>
    %cst_13 = arith.constant 0.000000e+00 : f32
    %33 = vector.shape_cast %5 : vector<1x128xi1> to vector<1x128xi1>
    %34 = vector.broadcast %33 : vector<1x128xi1> to vector<32x128xi1>
    %35 = vector.broadcast %cst_13 : f32 to vector<32x128xf32>
    %36 = arith.select %34, %28#1, %35 : vector<32x128xi1>, vector<32x128xf32>
    %37 = tpu.concatenate %13, %32, %36, %23 in 0 : vector<32x128xf32>, vector<32x128xf32>, vector<32x128xf32>, vector<32x128xf32> -> vector<128x128xf32>
    %c0_14 = arith.constant 0 : index
    %c0_15 = arith.constant 0 : index
    %38 = vector.load %arg4[%c0_14, %c0_15] : memref<32x128xf32, #tpu.memory_space<vmem>>, vector<32x128xf32>
    %cst_16 = arith.constant dense<0.000000e+00> : vector<32x128xf32>
    %39 = tpu.matmul %38, %37, %cst_16 {dimension_numbers = #tpu.dot_dimension_numbers<[1], [0], [0], [1], [0, 0, 1, 1], [], []>} : vector<32x128xf32>, vector<128x128xf32>, vector<32x128xf32> -> vector<32x128xf32>
    %c0_17 = arith.constant 0 : index
    %c0_18 = arith.constant 0 : index
    %40 = vector.load %arg5[%c0_17, %c0_18] : memref<32x1xf32, #tpu.memory_space<vmem>>, vector<32x1xf32>
    %41 = vector.broadcast %40 : vector<32x1xf32> to vector<32x128xf32>
    %42 = arith.addf %39, %41 : vector<32x128xf32>
    %cst_19 = arith.constant 0.000000e+00 : f32
    %43 = vector.broadcast %cst_19 : f32 to vector<32x128xf32>
    %44 = arith.maximumf %42, %43 : vector<32x128xf32>
    %c0_20 = arith.constant 0 : index
    %c0_21 = arith.constant 0 : index
    %45 = vector.load %arg6[%c0_20, %c0_21] : memref<32x128xf32, #tpu.memory_space<vmem>>, vector<32x128xf32>
    tpu.vector_store %arg6[%c0_20, %c0_21], %44 {strides = array<i32>} : memref<32x128xf32, #tpu.memory_space<vmem>>, vector<32x128xf32>,
    return
  }
  func.func @transform_0(%arg0: i32) -> (i32, i32) {
    %c0_i32 = arith.constant 0 : i32
    %c0_i32_0 = arith.constant 0 : i32
    %c0_i32_1 = arith.constant 0 : i32
    return %c0_i32, %c0_i32_0 : i32, i32
  }
  func.func @transform_1(%arg0: i32) -> (i32, i32) {
    %c0_i32 = arith.constant 0 : i32
    %c0_i32_0 = arith.constant 0 : i32
    %c0_i32_1 = arith.constant 0 : i32
    return %c0_i32, %c0_i32_0 : i32, i32
  }
  func.func @transform_2(%arg0: i32) -> (i32, i32) {
    %c0_i32 = arith.constant 0 : i32
    %c0_i32_0 = arith.constant 0 : i32
    return %c0_i32, %arg0 : i32, i32
  }
  func.func @transform_3(%arg0: i32) -> (i32, i32) {
    %c0_i32 = arith.constant 0 : i32
    %c0_i32_0 = arith.constant 0 : i32
    %c0_i32_1 = arith.constant 0 : i32
    return %c0_i32, %c0_i32_0 : i32, i32
  }
  func.func @transform_4(%arg0: i32) -> (i32, i32) {
    %c0_i32 = arith.constant 0 : i32
    %c0_i32_0 = arith.constant 0 : i32
    %c0_i32_1 = arith.constant 0 : i32
    return %c0_i32, %c0_i32_0 : i32, i32
  }
  func.func @transform_5(%arg0: i32) -> (i32, i32) {
    %c0_i32 = arith.constant 0 : i32
    %c0_i32_0 = arith.constant 0 : i32
    return %c0_i32, %arg0 : i32, i32
  }
}

</mosaic_0001>

<llo_original>
// kernel: principal_aggregate.1
$region0: #{principal_aggregate.1}
  #allocation0 [shape = 'u32[]', space=smem, size = 0x4, offset = 0x4, fixed_abs, tag = 'smem constant byte address 0x4 - core index']
  #allocation1 [shape = 'u32[144,128]{1,0:T(1,128)}', space=vmem, size = 0x12000, scoped, tag = 'internal scratch']
  %s0 = inlined_call_operand.vmem [shape: f32[256,32], index: 0, kind: input, shape index: {}]
  %s1 = inlined_call_operand.vmem [shape: f32[65,256], index: 1, kind: input, shape index: {}]
  %s2 = inlined_call_operand.vmem [shape: f32[256,256], index: 2, kind: input, shape index: {}]
  %s3 = inlined_call_operand.vmem [shape: f32[32,128], index: 3, kind: input, shape index: {}]
  %s4 = inlined_call_operand.vmem [shape: f32[32,1], index: 4, kind: input, shape index: {}]
  %s5 = inlined_call_operand.hbm [shape: f32[32,256], index: 5, kind: output, shape index: {}]
  %s6 = sld [smem:[#allocation0]]
  $region98: #{principal_aggregate.1} parent=0
    _
  %s8 = ssub.s32 1, %s6
  %s9 = scalar_select 0, %s8, %s6
  $region1: #{principal_aggregate.1} parent=0
    #allocation2 [shape = 'u8[262144]{0}', space=vmem, size = 0x40000, scoped, tag = 'input window, operand 2']
    #allocation3 [shape = 'u8[32768]{0}', space=vmem, size = 0x8000, scoped, tag = 'output window, operand 0']
    #allocation4 [shape = 's32[2]{0}', space=sflag, size = 0x8, scoped, tag = 'scoped memory for principal_aggregate.1']
    %10 = vsyncpa [#allocation4], 0
    %s11 = scalar_lea.sflag [#allocation4], 1
    %12 = vsyncpa %s11, 0
    loop: start=0, step=1, limit=4
    $region2: #{principal_aggregate.1} parent=1 // loop_pre_header
      _
    $region3: #{principal_aggregate.1} parent=1 // loop_header
      %s14 = sphi 0, %s18
      %p15 = scmp.ge.s32.totalorder %s14, 4
      %s22 = sphi 0, %s22
      %s24 = sphi 0, %s22
      %s25 = sphi 0, %s24
      %s39 = sphi 0, %s25
      %s43 = sphi 0, %s43
      %s45 = sphi 0, %s43
      %s46 = sphi 0, %s45
      %s60 = sphi 0, %s46
      %s66 = sphi 0, %s68
      %s69 = sphi 0, %s66
      %s70 = sphi 0, %s69
      %s86 = sphi 0, %s70
      %s90 = sphi 0, %s90
      %s92 = sphi 0, %s90
      %s93 = sphi 0, %s92
      %s107 = sphi 0, %s93
      %s111 = sphi 0, %s111
      %s113 = sphi 0, %s111
      %s114 = sphi 0, %s113
      %s128 = sphi 0, %s114
      %s134 = sphi 0, %s136
      %s137 = sphi 0, %s134
      %s138 = sphi 0, %s137
      %s154 = sphi 0, %s138
    $region4: #{principal_aggregate.1} parent=1 // loop_header_branch
      %17 = sbr.rel (%p15) target = $region8
    $region5: #{principal_aggregate.1} parent=1 // loop_body
      %s19 = ssub.s32 %s14, 1
      %s20 = ssub.s32 %s14, 2
      %s21 = sadd.s32 %s14, 1
      %s23 = sadd.s32 %s22, 1
      %p26 = scmp.eq.s32.totalorder %s14, 1
      %p27 = scmp.ne.s32.totalorder %s22, %s24
      %p28 = scmp.eq.s32.totalorder %s14, 0
      %p29 = por %p27, %p28
      %p30 = scmp.ne.s32.totalorder %s22, %s24
      %p31 = scmp.eq.s32.totalorder %s19, 1
      %p32 = por %p30, %p31
      %p33 = scmp.ne.s32.totalorder %s24, %s25
      %p34 = scmp.eq.s32.totalorder %s19, 0
      %p35 = por %p33, %p34
      %p36 = scmp.ne.s32.totalorder %s24, %s25
      %p37 = scmp.eq.s32.totalorder %s20, 1
      %p38 = por %p36, %p37
      %p40 = scmp.ne.s32.totalorder %s25, %s39
      %p41 = scmp.eq.s32.totalorder %s20, 0
      %p42 = por %p40, %p41
      %s44 = sadd.s32 %s43, 1
      %p47 = scmp.eq.s32.totalorder %s14, 1
      %p48 = scmp.ne.s32.totalorder %s43, %s45
      %p49 = scmp.eq.s32.totalorder %s14, 0
      %p50 = por %p48, %p49
      %p51 = scmp.ne.s32.totalorder %s43, %s45
      %p52 = scmp.eq.s32.totalorder %s19, 1
      %p53 = por %p51, %p52
      %p54 = scmp.ne.s32.totalorder %s45, %s46
      %p55 = scmp.eq.s32.totalorder %s19, 0
      %p56 = por %p54, %p55
      %p57 = scmp.ne.s32.totalorder %s45, %s46
      %p58 = scmp.eq.s32.totalorder %s20, 1
      %p59 = por %p57, %p58
      %p61 = scmp.ne.s32.totalorder %s46, %s60
      %p62 = scmp.eq.s32.totalorder %s20, 0
      %p63 = por %p61, %p62
      %s64 = ssub.s32 %s14, %s21
      %p65 = scmp.eq.s32.totalorder %s64, 0
      %s67 = sadd.s32 %s66, 1
      %s68 = scalar_select %p65, %s66, %s67
      %p71 = pneg %p65
      %p72 = scmp.eq.s32.totalorder %s14, 1
      %p73 = por %p71, %p72
      %p74 = scmp.ne.s32.totalorder %s66, %s69
      %p75 = scmp.eq.s32.totalorder %s14, 0
      %p76 = por %p74, %p75
      %p77 = scmp.ne.s32.totalorder %s66, %s69
      %p78 = scmp.eq.s32.totalorder %s19, 1
      %p79 = por %p77, %p78
      %p80 = scmp.ne.s32.totalorder %s69, %s70
      %p81 = scmp.eq.s32.totalorder %s19, 0
      %p82 = por %p80, %p81
      %p83 = scmp.ne.s32.totalorder %s69, %s70
      %p84 = scmp.eq.s32.totalorder %s20, 1
      %p85 = por %p83, %p84
      %p87 = scmp.ne.s32.totalorder %s70, %s86
      %p88 = scmp.eq.s32.totalorder %s20, 0
      %p89 = por %p87, %p88
      %s91 = sadd.s32 %s90, 1
      %p94 = scmp.eq.s32.totalorder %s14, 1
      %p95 = scmp.ne.s32.totalorder %s90, %s92
      %p96 = scmp.eq.s32.totalorder %s14, 0
      %p97 = por %p95, %p96
      %p98 = scmp.ne.s32.totalorder %s90, %s92
      %p99 = scmp.eq.s32.totalorder %s19, 1
      %p100 = por %p98, %p99
      %p101 = scmp.ne.s32.totalorder %s92, %s93
      %p102 = scmp.eq.s32.totalorder %s19, 0
      %p103 = por %p101, %p102
      %p104 = scmp.ne.s32.totalorder %s92, %s93
      %p105 = scmp.eq.s32.totalorder %s20, 1
      %p106 = por %p104, %p105
      %p108 = scmp.ne.s32.totalorder %s93, %s107
      %p109 = scmp.eq.s32.totalorder %s20, 0
      %p110 = por %p108, %p109
      %s112 = sadd.s32 %s111, 1
      %p115 = scmp.eq.s32.totalorder %s14, 1
      %p116 = scmp.ne.s32.totalorder %s111, %s113
      %p117 = scmp.eq.s32.totalorder %s14, 0
      %p118 = por %p116, %p117
      %p119 = scmp.ne.s32.totalorder %s111, %s113
      %p120 = scmp.eq.s32.totalorder %s19, 1
      %p121 = por %p119, %p120
      %p122 = scmp.ne.s32.totalorder %s113, %s114
      %p123 = scmp.eq.s32.totalorder %s19, 0
      %p124 = por %p122, %p123
      %p125 = scmp.ne.s32.totalorder %s113, %s114
      %p126 = scmp.eq.s32.totalorder %s20, 1
      %p127 = por %p125, %p126
      %p129 = scmp.ne.s32.totalorder %s114, %s128
      %p130 = scmp.eq.s32.totalorder %s20, 0
      %p131 = por %p129, %p130
      %s132 = ssub.s32 %s14, %s21
      %p133 = scmp.eq.s32.totalorder %s132, 0
      %s135 = sadd.s32 %s134, 1
      %s136 = scalar_select %p133, %s134, %s135
      %p139 = pneg %p133
      %p140 = scmp.eq.s32.totalorder %s14, 1
      %p141 = por %p139, %p140
      %p142 = scmp.ne.s32.totalorder %s134, %s137
      %p143 = scmp.eq.s32.totalorder %s14, 0
      %p144 = por %p142, %p143
      %p145 = scmp.ne.s32.totalorder %s134, %s137
      %p146 = scmp.eq.s32.totalorder %s19, 1
      %p147 = por %p145, %p146
      %p148 = scmp.ne.s32.totalorder %s137, %s138
      %p149 = scmp.eq.s32.totalorder %s19, 0
      %p150 = por %p148, %p149
      %p151 = scmp.ne.s32.totalorder %s137, %s138
      %p152 = scmp.eq.s32.totalorder %s20, 1
      %p153 = por %p151, %p152
      %p155 = scmp.ne.s32.totalorder %s138, %s154
      %p156 = scmp.eq.s32.totalorder %s20, 0
      %p157 = por %p155, %p156
      %p158 = scmp.le.s32.totalorder 1, %s14
      %p159 = scmp.lt.s32.totalorder %s14, 3
      %p160 = pnand %p158, %p159
      %p161 = pneg %p160
      // Predicated region
      $region9: #{principal_aggregate.1} parent=5 // pred_check
        _
      $region10: #{principal_aggregate.1} parent=5 // pred_check_branch
        %163 = sbr.rel (%p160) target = $region12
      $region11: #{principal_aggregate.1} parent=5 // pred_region
        %s164 = ssub.s32 %s14, 1
        // Predicated region
        $region13: #{principal_aggregate.1} parent=11 // pred_check
          %p165 = pneg %p35
        $region14: #{principal_aggregate.1} parent=11 // pred_check_branch
          %167 = sbr.rel (%p165) target = $region16
        $region15: #{principal_aggregate.1} parent=11 // pred_region
          _
        $region16: #{principal_aggregate.1} parent=11 // pred_fallthru
          _
        // Predicated region
        $region17: #{principal_aggregate.1} parent=11 // pred_check
          %p168 = pneg %p56
        $region18: #{principal_aggregate.1} parent=11 // pred_check_branch
          %170 = sbr.rel (%p168) target = $region20
        $region19: #{principal_aggregate.1} parent=11 // pred_region
          _
        $region20: #{principal_aggregate.1} parent=11 // pred_fallthru
          _
        // Predicated region
        $region21: #{principal_aggregate.1} parent=11 // pred_check
          %p171 = pneg %p103
        $region22: #{principal_aggregate.1} parent=11 // pred_check_branch
          %173 = sbr.rel (%p171) target = $region24
        $region23: #{principal_aggregate.1} parent=11 // pred_region
          _
        $region24: #{principal_aggregate.1} parent=11 // pred_fallthru
          _
        // Predicated region
        $region25: #{principal_aggregate.1} parent=11 // pred_check
          %p174 = pneg %p124
        $region26: #{principal_aggregate.1} parent=11 // pred_check_branch
          %176 = sbr.rel (%p174) target = $region28
        $region27: #{principal_aggregate.1} parent=11 // pred_region
          _
        $region28: #{principal_aggregate.1} parent=11 // pred_fallthru
          _
      $region12: #{principal_aggregate.1} parent=5 // pred_fallthru
        _
      %p177 = scmp.lt.s32.totalorder %s14, 2
      // Predicated region
      $region29: #{principal_aggregate.1} parent=5 // pred_check
        %p178 = pneg %p177
      $region30: #{principal_aggregate.1} parent=5 // pred_check_branch
        %180 = sbr.rel (%p178) target = $region32
      $region31: #{principal_aggregate.1} parent=5 // pred_region
        // Predicated region
        $region33: #{principal_aggregate.1} parent=31 // pred_check
          %p181 = pneg %p76
        $region34: #{principal_aggregate.1} parent=31 // pred_check_branch
          %183 = sbr.rel (%p181) target = $region36
        $region35: #{principal_aggregate.1} parent=31 // pred_region
          %s184 = sand.u32 %s66, 1
          %s185 = sand.u32 %s66, 1
          %s186 = smul.addr %s185, 256
          %s187 = scalar_lea.vmem [#allocation2], %s186
          %s188 = smul.addr %s14, 8
          %s189 = scalar_lea.vmem %s2, %s188
          // Predicated region
          $region37: #{principal_aggregate.1} parent=35 // pred_check
            _
          $region38: #{principal_aggregate.1} parent=35 // pred_check_branch
            %191 = sbr.rel (0) target = $region40
          $region39: #{principal_aggregate.1} parent=35 // pred_region
            // Predicated region
            $region41: #{principal_aggregate.1} parent=39 // pred_check
              _
            $region42: #{principal_aggregate.1} parent=39 // pred_check_branch
              %193 = sbr.rel (0) target = $region44
            $region43: #{principal_aggregate.1} parent=39 // pred_region
              // Predicated region
              $region56: #{principal_aggregate.1} parent=43 // pred_check
                _
              $region57: #{principal_aggregate.1} parent=43 // pred_check_branch
                %271 = sbr.rel (0) target = $region59
              $region58: #{principal_aggregate.1} parent=43 // pred_region
                loop: start=0, step=1, limit=1
                $region60: #{principal_aggregate.1} parent=58 // loop_pre_header
                  _
                $region61: #{principal_aggregate.1} parent=58 // loop_header
                  %s273 = sphi 0, %s277
                  %p274 = scmp.ge.s32.totalorder %s273, 1
                  %s278 = sphi %s189, %s189
                  %s279 = sphi %s187, %s187
                $region62: #{principal_aggregate.1} parent=58 // loop_header_branch
                  %276 = sbr.rel (%p274) target = $region66
                $region63: #{principal_aggregate.1} parent=58 // loop_body
                  %v280 = vld [vmem:[%s278] sm:$0xff]
                  %281 = vst [vmem:[%s279] sm:$0xff] %v280
                  %v282 = vld [vmem:[%s278 + $0x10] sm:$0xff]
                  %283 = vst [vmem:[%s279 + $0x8] sm:$0xff] %v282
                  %v284 = vld [vmem:[%s278 + $0x20] sm:$0xff]
                  %285 = vst [vmem:[%s279 + $0x10] sm:$0xff] %v284
                  %v286 = vld [vmem:[%s278 + $0x30] sm:$0xff]
                  %287 = vst [vmem:[%s279 + $0x18] sm:$0xff] %v286
                  %v288 = vld [vmem:[%s278 + $0x40] sm:$0xff]
                  %289 = vst [vmem:[%s279 + $0x20] sm:$0xff] %v288
                  %v290 = vld [vmem:[%s278 + $0x50] sm:$0xff]
                  %291 = vst [vmem:[%s279 + $0x28] sm:$0xff] %v290
                  %v292 = vld [vmem:[%s278 + $0x60] sm:$0xff]
                  %293 = vst [vmem:[%s279 + $0x30] sm:$0xff] %v292
                  %v294 = vld [vmem:[%s278 + $0x70] sm:$0xff]
                  %295 = vst [vmem:[%s279 + $0x38] sm:$0xff] %v294
                  %v296 = vld [vmem:[%s278 + $0x80] sm:$0xff]
                  %297 = vst [vmem:[%s279 + $0x40] sm:$0xff] %v296
                  %v298 = vld [vmem:[%s278 + $0x90] sm:$0xff]
                  %299 = vst [vmem:[%s279 + $0x48] sm:$0xff] %v298
                  %v300 = vld [vmem:[%s278 + $0xa0] sm:$0xff]
                  %301 = vst [vmem:[%s279 + $0x50] sm:$0xff] %v300
                  %v302 = vld [vmem:[%s278 + $0xb0] sm:$0xff]
                  %303 = vst [vmem:[%s279 + $0x58] sm:$0xff] %v302
                  %v304 = vld [vmem:[%s278 + $0xc0] sm:$0xff]
                  %305 = vst [vmem:[%s279 + $0x60] sm:$0xff] %v304
                  %v306 = vld [vmem:[%s278 + $0xd0] sm:$0xff]
                  %307 = vst [vmem:[%s279 + $0x68] sm:$0xff] %v306
                  %v308 = vld [vmem:[%s278 + $0xe0] sm:$0xff]
                  %309 = vst [vmem:[%s279 + $0x70] sm:$0xff] %v308
                  %v310 = vld [vmem:[%s278 + $0xf0] sm:$0xff]
                  %311 = vst [vmem:[%s279 + $0x78] sm:$0xff] %v310
                  %v312 = vld [vmem:[%s278 + $0x100] sm:$0xff]
                  %313 = vst [vmem:[%s279 + $0x80] sm:$0xff] %v312
                  %v314 = vld [vmem:[%s278 + $0x110] sm:$0xff]
                  %315 = vst [vmem:[%s279 + $0x88] sm:$0xff] %v314
                  %v316 = vld [vmem:[%s278 + $0x120] sm:$0xff]
                  %317 = vst [vmem:[%s279 + $0x90] sm:$0xff] %v316
                  %v318 = vld [vmem:[%s278 + $0x130] sm:$0xff]
                  %319 = vst [vmem:[%s279 + $0x98] sm:$0xff] %v318
                  %v320 = vld [vmem:[%s278 + $0x140] sm:$0xff]
                  %321 = vst [vmem:[%s279 + $0xa0] sm:$0xff] %v320
                  %v322 = vld [vmem:[%s278 + $0x150] sm:$0xff]
                  %323 = vst [vmem:[%s279 + $0xa8] sm:$0xff] %v322
                  %v324 = vld [vmem:[%s278 + $0x160] sm:$0xff]
                  %325 = vst [vmem:[%s279 + $0xb0] sm:$0xff] %v324
                  %v326 = vld [vmem:[%s278 + $0x170] sm:$0xff]
                  %327 = vst [vmem:[%s279 + $0xb8] sm:$0xff] %v326
                  %v328 = vld [vmem:[%s278 + $0x180] sm:$0xff]
                  %329 = vst [vmem:[%s279 + $0xc0] sm:$0xff] %v328
                  %v330 = vld [vmem:[%s278 + $0x190] sm:$0xff]
                  %331 = vst [vmem:[%s279 + $0xc8] sm:$0xff] %v330
                  %v332 = vld [vmem:[%s278 + $0x1a0] sm:$0xff]
                  %333 = vst [vmem:[%s279 + $0xd0] sm:$0xff] %v332
                  %v334 = vld [vmem:[%s278 + $0x1b0] sm:$0xff]
                  %335 = vst [vmem:[%s279 + $0xd8] sm:$0xff] %v334
                  %v336 = vld [vmem:[%s278 + $0x1c0] sm:$0xff]
                  %337 = vst [vmem:[%s279 + $0xe0] sm:$0xff] %v336
                  %v338 = vld [vmem:[%s278 + $0x1d0] sm:$0xff]
                  %339 = vst [vmem:[%s279 + $0xe8] sm:$0xff] %v338
                  %v340 = vld [vmem:[%s278 + $0x1e0] sm:$0xff]
                  %341 = vst [vmem:[%s279 + $0xf0] sm:$0xff] %v340
                  %v342 = vld [vmem:[%s278 + $0x1f0] sm:$0xff]
                  %343 = vst [vmem:[%s279 + $0xf8] sm:$0xff] %v342
                $region64: #{principal_aggregate.1} parent=58 // loop_footer
                  %s277 = sadd.s32 1, %s273
                $region65: #{principal_aggregate.1} parent=58 // loop_footer_branch
                  %272 = sbr.rel target = $region61
                $region66: #{principal_aggregate.1} parent=58 // loop_exit
                  _
              $region59: #{principal_aggregate.1} parent=43 // pred_fallthru
                _
              // Predicated region
              $region67: #{principal_aggregate.1} parent=43 // pred_check
                _
              $region68: #{principal_aggregate.1} parent=43 // pred_check_branch
                %345 = sbr.rel target = $region70
              $region69: #{principal_aggregate.1} parent=43 // pred_region
                _
              $region70: #{principal_aggregate.1} parent=43 // pred_fallthru
                _
            $region44: #{principal_aggregate.1} parent=39 // pred_fallthru
              _
            // Predicated region
            $region45: #{principal_aggregate.1} parent=39 // pred_check
              _
            $region46: #{principal_aggregate.1} parent=39 // pred_check_branch
              %195 = sbr.rel target = $region48
            $region47: #{principal_aggregate.1} parent=39 // pred_region
              %s197 = ssub.s32 256, 1
              loop: start=0, step=1, limit=1
              $region49: #{principal_aggregate.1} parent=47 // loop_pre_header
                _
              $region50: #{principal_aggregate.1} parent=47 // loop_header
                %s199 = sphi 0, %s203
                %p200 = scmp.ge.s32.totalorder %s199, 1
                %s204 = sphi %s189, %s189
                %s205 = sphi %s187, %s187
              $region51: #{principal_aggregate.1} parent=47 // loop_header_branch
                %202 = sbr.rel (%p200) target = $region55
              $region52: #{principal_aggregate.1} parent=47 // loop_body
                %v206 = vld [vmem:[%s204] sm:%s197]
                %207 = vst [vmem:[%s205] sm:%s197] %v206
                %v208 = vld [vmem:[%s204 + $0x10] sm:%s197]
                %209 = vst [vmem:[%s205 + $0x8] sm:%s197] %v208
                %v210 = vld [vmem:[%s204 + $0x20] sm:%s197]
                %211 = vst [vmem:[%s205 + $0x10] sm:%s197] %v210
                %v212 = vld [vmem:[%s204 + $0x30] sm:%s197]
                %213 = vst [vmem:[%s205 + $0x18] sm:%s197] %v212
                %v214 = vld [vmem:[%s204 + $0x40] sm:%s197]
                %215 = vst [vmem:[%s205 + $0x20] sm:%s197] %v214
                %v216 = vld [vmem:[%s204 + $0x50] sm:%s197]
                %217 = vst [vmem:[%s205 + $0x28] sm:%s197] %v216
                %v218 = vld [vmem:[%s204 + $0x60] sm:%s197]
                %219 = vst [vmem:[%s205 + $0x30] sm:%s197] %v218
                %v220 = vld [vmem:[%s204 + $0x70] sm:%s197]
                %221 = vst [vmem:[%s205 + $0x38] sm:%s197] %v220
                %v222 = vld [vmem:[%s204 + $0x80] sm:%s197]
                %223 = vst [vmem:[%s205 + $0x40] sm:%s197] %v222
                %v224 = vld [vmem:[%s204 + $0x90] sm:%s197]
                %225 = vst [vmem:[%s205 + $0x48] sm:%s197] %v224
                %v226 = vld [vmem:[%s204 + $0xa0] sm:%s197]
                %227 = vst [vmem:[%s205 + $0x50] sm:%s197] %v226
                %v228 = vld [vmem:[%s204 + $0xb0] sm:%s197]
                %229 = vst [vmem:[%s205 + $0x58] sm:%s197] %v228
                %v230 = vld [vmem:[%s204 + $0xc0] sm:%s197]
                %231 = vst [vmem:[%s205 + $0x60] sm:%s197] %v230
                %v232 = vld [vmem:[%s204 + $0xd0] sm:%s197]
                %233 = vst [vmem:[%s205 + $0x68] sm:%s197] %v232
                %v234 = vld [vmem:[%s204 + $0xe0] sm:%s197]
                %235 = vst [vmem:[%s205 + $0x70] sm:%s197] %v234
                %v236 = vld [vmem:[%s204 + $0xf0] sm:%s197]
                %237 = vst [vmem:[%s205 + $0x78] sm:%s197] %v236
                %v238 = vld [vmem:[%s204 + $0x100] sm:%s197]
                %239 = vst [vmem:[%s205 + $0x80] sm:%s197] %v238
                %v240 = vld [vmem:[%s204 + $0x110] sm:%s197]
                %241 = vst [vmem:[%s205 + $0x88] sm:%s197] %v240
                %v242 = vld [vmem:[%s204 + $0x120] sm:%s197]
                %243 = vst [vmem:[%s205 + $0x90] sm:%s197] %v242
                %v244 = vld [vmem:[%s204 + $0x130] sm:%s197]
                %245 = vst [vmem:[%s205 + $0x98] sm:%s197] %v244
                %v246 = vld [vmem:[%s204 + $0x140] sm:%s197]
                %247 = vst [vmem:[%s205 + $0xa0] sm:%s197] %v246
                %v248 = vld [vmem:[%s204 + $0x150] sm:%s197]
                %249 = vst [vmem:[%s205 + $0xa8] sm:%s197] %v248
                %v250 = vld [vmem:[%s204 + $0x160] sm:%s197]
                %251 = vst [vmem:[%s205 + $0xb0] sm:%s197] %v250
                %v252 = vld [vmem:[%s204 + $0x170] sm:%s197]
                %253 = vst [vmem:[%s205 + $0xb8] sm:%s197] %v252
                %v254 = vld [vmem:[%s204 + $0x180] sm:%s197]
                %255 = vst [vmem:[%s205 + $0xc0] sm:%s197] %v254
                %v256 = vld [vmem:[%s204 + $0x190] sm:%s197]
                %257 = vst [vmem:[%s205 + $0xc8] sm:%s197] %v256
                %v258 = vld [vmem:[%s204 + $0x1a0] sm:%s197]
                %259 = vst [vmem:[%s205 + $0xd0] sm:%s197] %v258
                %v260 = vld [vmem:[%s204 + $0x1b0] sm:%s197]
                %261 = vst [vmem:[%s205 + $0xd8] sm:%s197] %v260
                %v262 = vld [vmem:[%s204 + $0x1c0] sm:%s197]
                %263 = vst [vmem:[%s205 + $0xe0] sm:%s197] %v262
                %v264 = vld [vmem:[%s204 + $0x1d0] sm:%s197]
                %265 = vst [vmem:[%s205 + $0xe8] sm:%s197] %v264
                %v266 = vld [vmem:[%s204 + $0x1e0] sm:%s197]
                %267 = vst [vmem:[%s205 + $0xf0] sm:%s197] %v266
                %v268 = vld [vmem:[%s204 + $0x1f0] sm:%s197]
                %269 = vst [vmem:[%s205 + $0xf8] sm:%s197] %v268
              $region53: #{principal_aggregate.1} parent=47 // loop_footer
                %s203 = sadd.s32 1, %s199
              $region54: #{principal_aggregate.1} parent=47 // loop_footer_branch
                %198 = sbr.rel target = $region50
              $region55: #{principal_aggregate.1} parent=47 // loop_exit
                _
            $region48: #{principal_aggregate.1} parent=39 // pred_fallthru
              _
          $region40: #{principal_aggregate.1} parent=35 // pred_fallthru
            _
          %346 = vnop
        $region36: #{principal_aggregate.1} parent=31 // pred_fallthru
          _
      $region32: #{principal_aggregate.1} parent=5 // pred_fallthru
        _
      %p347 = scmp.le.s32.totalorder 1, %s14
      %p348 = scmp.lt.s32.totalorder %s14, 3
      %p349 = pnand %p347, %p348
      %p350 = pneg %p349
      // Predicated region
      $region71: #{principal_aggregate.1} parent=5 // pred_check
        _
      $region72: #{principal_aggregate.1} parent=5 // pred_check_branch
        %352 = sbr.rel (%p349) target = $region74
      $region73: #{principal_aggregate.1} parent=5 // pred_region
        %s353 = ssub.s32 %s14, 1
        %s354 = sand.u32 %s69, 1
        %s355 = sand.u32 %s69, 1
        %s356 = smul.addr %s355, 256
        %s357 = scalar_lea.vmem [#allocation2], %s356
        // Predicated region
        $region75: #{principal_aggregate.1} parent=73 // pred_check
          %p358 = pneg %p82
        $region76: #{principal_aggregate.1} parent=73 // pred_check_branch
          %360 = sbr.rel (%p358) target = $region78
        $region77: #{principal_aggregate.1} parent=73 // pred_region
          _
        $region78: #{principal_aggregate.1} parent=73 // pred_fallthru
          _
        %p361 = pneg %p35
        %p362 = pneg %p32
        %p363 = pneg %p56
        %p364 = pneg %p53
        %s365 = sand.u32 %s69, 1
        %s366 = sand.u32 %s69, 1
        %s367 = smul.addr %s366, 256
        %s368 = scalar_lea.vmem [#allocation2], %s367
        %p369 = pneg %p82
        %p370 = pneg %p79
        %p371 = pneg %p103
        %p372 = pneg %p100
        %p373 = pneg %p124
        %p374 = pneg %p121
        %p375 = pneg %p150
        %p376 = pneg %p147
        %s377 = sand.u32 %s137, 1
        %s378 = scalar_lea.sflag [#allocation4], %s377
        %s379 = sand.u32 %s137, 1
        %s380 = smul.addr %s379, 32
        %s381 = scalar_lea.vmem [#allocation3], %s380
        %v382 = vld [vmem:[%s1] sm:$0xff]
        %v383 = vld [vmem:[%s1 + $0x8] sm:$0xff]
        %v384 = vld [vmem:[%s1 + $0x10] sm:$0xff]
        %v385 = vld [vmem:[%s1 + $0x18] sm:$0xff]
        %v386 = vld [vmem:[%s1 + $0x20] sm:$0xff]
        %v387 = vld [vmem:[%s1 + $0x28] sm:$0xff]
        %v388 = vld [vmem:[%s1 + $0x30] sm:$0xff]
        %v389 = vld [vmem:[%s1 + $0x38] sm:$0xff]
        %v390 = vld [vmem:[%s1 + $0x40] sm:$0xff]
        %v391 = vld [vmem:[%s1 + $0x48] sm:$0xff]
        %v392 = vld [vmem:[%s1 + $0x50] sm:$0xff]
        %v393 = vld [vmem:[%s1 + $0x58] sm:$0xff]
        %v394 = vld [vmem:[%s1 + $0x60] sm:$0xff]
        %v395 = vld [vmem:[%s1 + $0x68] sm:$0xff]
        %v396 = vld [vmem:[%s1 + $0x70] sm:$0xff]
        %v397 = vld [vmem:[%s1 + $0x78] sm:$0xff]
        %v398 = vld [vmem:[%s1 + $0x80] sm:$0x1]
        %v399 = vld [vmem:[%s1 + $0x88] sm:$0x1]
        %v400 = vld [vmem:[%s357] sm:$0xff]
        %v401 = vld [vmem:[%s357 + $0x8] sm:$0xff]
        %v402 = vld [vmem:[%s357 + $0x10] sm:$0xff]
        %v403 = vld [vmem:[%s357 + $0x18] sm:$0xff]
        %v404 = vld [vmem:[%s357 + $0x20] sm:$0xff]
        %v405 = vld [vmem:[%s357 + $0x28] sm:$0xff]
        %v406 = vld [vmem:[%s357 + $0x30] sm:$0xff]
        %v407 = vld [vmem:[%s357 + $0x38] sm:$0xff]
        %v408 = vld [vmem:[%s357 + $0x40] sm:$0xff]
        %v409 = vld [vmem:[%s357 + $0x48] sm:$0xff]
        %v410 = vld [vmem:[%s357 + $0x50] sm:$0xff]
        %v411 = vld [vmem:[%s357 + $0x58] sm:$0xff]
        %v412 = vld [vmem:[%s357 + $0x60] sm:$0xff]
        %v413 = vld [vmem:[%s357 + $0x68] sm:$0xff]
        %v414 = vld [vmem:[%s357 + $0x70] sm:$0xff]
        %v415 = vld [vmem:[%s357 + $0x78] sm:$0xff]
        %v416 = vld [vmem:[%s357 + $0x80] sm:$0xff]
        %v417 = vld [vmem:[%s357 + $0x88] sm:$0xff]
        %v418 = vld [vmem:[%s357 + $0x90] sm:$0xff]
        %v419 = vld [vmem:[%s357 + $0x98] sm:$0xff]
        %v420 = vld [vmem:[%s357 + $0xa0] sm:$0xff]
        %v421 = vld [vmem:[%s357 + $0xa8] sm:$0xff]
        %v422 = vld [vmem:[%s357 + $0xb0] sm:$0xff]
        %v423 = vld [vmem:[%s357 + $0xb8] sm:$0xff]
        %v424 = vld [vmem:[%s357 + $0xc0] sm:$0xff]
        %v425 = vld [vmem:[%s357 + $0xc8] sm:$0xff]
        %v426 = vld [vmem:[%s357 + $0xd0] sm:$0xff]
        %v427 = vld [vmem:[%s357 + $0xd8] sm:$0xff]
        %v428 = vld [vmem:[%s357 + $0xe0] sm:$0xff]
        %v429 = vld [vmem:[%s357 + $0xe8] sm:$0xff]
        %v430 = vld [vmem:[%s357 + $0xf0] sm:$0xff]
        %v431 = vld [vmem:[%s357 + $0xf8] sm:$0xff]
        %432 = vmatprep.subr.mxu0 0.0
        %433 = vmatpush1.msra.mxu0 %v415
        %434 = vmatprep.subr.mxu0 0.0
        %435 = vmatpush1.msra.mxu0 %v414
        %436 = vmatprep.subr.mxu0 0.0
        %437 = vmatpush1.msra.mxu0 %v413
        %438 = vmatprep.subr.mxu0 0.0
        %439 = vmatpush1.msra.mxu0 %v412
        %440 = vmatprep.subr.mxu0 0.0
        %441 = vmatpush1.msra.mxu0 %v411
        %442 = vmatprep.subr.mxu0 0.0
        %443 = vmatpush1.msra.mxu0 %v410
        %444 = vmatprep.subr.mxu0 0.0
        %445 = vmatpush1.msra.mxu0 %v409
        %446 = vmatprep.subr.mxu0 0.0
        %447 = vmatpush1.msra.mxu0 %v408
        %448 = vmatprep.subr.mxu0 0.0
        %449 = vmatpush1.msra.mxu0 %v407
        %450 = vmatprep.subr.mxu0 0.0
        %451 = vmatpush1.msra.mxu0 %v406
        %452 = vmatprep.subr.mxu0 0.0
        %453 = vmatpush1.msra.mxu0 %v405
        %454 = vmatprep.subr.mxu0 0.0
        %455 = vmatpush1.msra.mxu0 %v404
        %456 = vmatprep.subr.mxu0 0.0
        %457 = vmatpush1.msra.mxu0 %v403
        %458 = vmatprep.subr.mxu0 0.0
        %459 = vmatpush1.msra.mxu0 %v402
        %460 = vmatprep.subr.mxu0 0.0
        %461 = vmatpush1.msra.mxu0 %v401
        %462 = vmatprep.subr.mxu0 0.0
        %463 = vmatpush1.msra.mxu0 %v400
        %464 = vmatprep.subr.mxu0 0.0
        %465 = vmatpush2.msra.mxu0 %v431
        %466 = vmatprep.subr.mxu0 0.0
        %467 = vmatpush2.msra.mxu0 %v430
        %468 = vmatprep.subr.mxu0 0.0
        %469 = vmatpush2.msra.mxu0 %v429
        %470 = vmatprep.subr.mxu0 0.0
        %471 = vmatpush2.msra.mxu0 %v428
        %472 = vmatprep.subr.mxu0 0.0
        %473 = vmatpush2.msra.mxu0 %v427
        %474 = vmatprep.subr.mxu0 0.0
        %475 = vmatpush2.msra.mxu0 %v426
        %476 = vmatprep.subr.mxu0 0.0
        %477 = vmatpush2.msra.mxu0 %v425
        %478 = vmatprep.subr.mxu0 0.0
        %479 = vmatpush2.msra.mxu0 %v424
        %480 = vmatprep.subr.mxu0 0.0
        %481 = vmatpush2.msra.mxu0 %v423
        %482 = vmatprep.subr.mxu0 0.0
        %483 = vmatpush2.msra.mxu0 %v422
        %484 = vmatprep.subr.mxu0 0.0
        %485 = vmatpush2.msra.mxu0 %v421
        %486 = vmatprep.subr.mxu0 0.0
        %487 = vmatpush2.msra.mxu0 %v420
        %488 = vmatprep.subr.mxu0 0.0
        %489 = vmatpush2.msra.mxu0 %v419
        %490 = vmatprep.subr.mxu0 0.0
        %491 = vmatpush2.msra.mxu0 %v418
        %492 = vmatprep.subr.mxu0 0.0
        %493 = vmatpush2.msra.mxu0 %v417
        %494 = vmatprep.subr.mxu0 0.0
        %495 = vmatpush2.msra.mxu0 %v416
        %496 = vmatprep.mubr.f32.mxu0 %v383
        %497 = vmatmul.mubr.f32.gmra.mxu0 %v382
        %v498 = vpop.f32.mrf.mxu0
        %v499 = vadd.f32 0.0, %v498
        %v500 = vpop.f32.mrf.mxu0
        %501 = vmatprep.mubr.f32.mxu0 %v385
        %502 = vmatmul.mubr.f32.gmra.mxu0 %v384
        %v503 = vpop.f32.mrf.mxu0
        %v504 = vadd.f32 0.0, %v503
        %v505 = vpop.f32.mrf.mxu0
        %506 = vmatprep.mubr.f32.mxu0 %v387
        %507 = vmatmul.mubr.f32.gmra.mxu0 %v386
        %v508 = vpop.f32.mrf.mxu0
        %v509 = vadd.f32 0.0, %v508
        %v510 = vpop.f32.mrf.mxu0
        %511 = vmatprep.mubr.f32.mxu0 %v389
        %512 = vmatmul.mubr.f32.gmra.mxu0 %v388
        %v513 = vpop.f32.mrf.mxu0
        %v514 = vadd.f32 0.0, %v513
        %v515 = vpop.f32.mrf.mxu0
        %516 = vmatprep.mubr.f32.mxu0 %v391
        %517 = vmatmul.mubr.f32.gmra.mxu0 %v390
        %v518 = vpop.f32.mrf.mxu0
        %v519 = vadd.f32 0.0, %v518
        %v520 = vpop.f32.mrf.mxu0
        %521 = vmatprep.mubr.f32.mxu0 %v393
        %522 = vmatmul.mubr.f32.gmra.mxu0 %v392
        %v523 = vpop.f32.mrf.mxu0
        %v524 = vadd.f32 0.0, %v523
        %v525 = vpop.f32.mrf.mxu0
        %526 = vmatprep.mubr.f32.mxu0 %v395
        %527 = vmatmul.mubr.f32.gmra.mxu0 %v394
        %v528 = vpop.f32.mrf.mxu0
        %v529 = vadd.f32 0.0, %v528
        %v530 = vpop.f32.mrf.mxu0
        %531 = vmatprep.mubr.f32.mxu0 %v397
        %532 = vmatmul.mubr.f32.gmra.mxu0 %v396
        %v533 = vpop.f32.mrf.mxu0
        %v534 = vadd.f32 0.0, %v533
        %v535 = vpop.f32.mrf.mxu0
        %536 = vmatprep.mubr.f32.mxu0 %v399
        %537 = vmatmul.mubr.f32.gmra.mxu0 %v398
        %v538 = vpop.f32.mrf.mxu0
        %v539 = vadd.f32 0.0, %v538
        %v540 = vpop.f32.mrf.mxu0
        %541 = vdwg.mxu0
        %vm542 = vcmp.gt.f32.partialorder %v539, 0.0
        %v543 = vmax.f32 %v539, 1.0
        %v544 = vrcp.pop %v543
        %v545 = vsel %vm542, %v544, 0.0
        %v546 = vlaneseq
        %v547 = vshrl.u32 %v546, 7
        %v548 = vsub.s32 0, %v547
        %v549 = vrot.slane %v545, %v548
        %v550 = vmul.f32 %v499, %v549
        %v551 = vmul.f32 %v504, %v549
        %v552 = vmul.f32 %v509, %v549
        %v553 = vmul.f32 %v514, %v549
        %v554 = vmul.f32 %v519, %v549
        %v555 = vmul.f32 %v524, %v549
        %v556 = vmul.f32 %v529, %v549
        %v557 = vmul.f32 %v534, %v549
        %v558 = vmul.f32 %v550, %v550
        %v559 = vmul.f32 %v551, %v551
        %v560 = vmul.f32 %v552, %v552
        %v561 = vmul.f32 %v553, %v553
        %v562 = vsub.f32 %v554, %v558
        %v563 = vsub.f32 %v555, %v559
        %v564 = vsub.f32 %v556, %v560
        %v565 = vsub.f32 %v557, %v561
        %v566 = vmax.f32 %v562, 0.0
        %v567 = vmax.f32 %v563, 0.0
        %v568 = vmax.f32 %v564, 0.0
        %v569 = vmax.f32 %v565, 0.0
        %v570 = vadd.f32 %v566, 1e-05
        %v571 = vadd.f32 %v567, 1e-05
        %v572 = vadd.f32 %v568, 1e-05
        %v573 = vadd.f32 %v569, 1e-05
        %v574 = vrsqrt.pop %v570
        %v575 = vmul.f32 %v570, %v574
        %vm576 = vcmp.eq.f32.partialorder %v570, inf
        %v577 = vsel %vm576, %v570, %v575
        %vm578 = vcmp.eq.f32.partialorder %v570, 0.0
        %v579 = vand.u32 %v570, 2147483648
        %v580 = vsel %vm578, %v579, %v577
        %v581 = vrsqrt.pop %v571
        %v582 = vmul.f32 %v571, %v581
        %vm583 = vcmp.eq.f32.partialorder %v571, inf
        %v584 = vsel %vm583, %v571, %v582
        %vm585 = vcmp.eq.f32.partialorder %v571, 0.0
        %v586 = vand.u32 %v571, 2147483648
        %v587 = vsel %vm585, %v586, %v584
        %v588 = vrsqrt.pop %v572
        %v589 = vmul.f32 %v572, %v588
        %vm590 = vcmp.eq.f32.partialorder %v572, inf
        %v591 = vsel %vm590, %v572, %v589
        %vm592 = vcmp.eq.f32.partialorder %v572, 0.0
        %v593 = vand.u32 %v572, 2147483648
        %v594 = vsel %vm592, %v593, %v591
        %v595 = vrsqrt.pop %v573
        %v596 = vmul.f32 %v573, %v595
        %vm597 = vcmp.eq.f32.partialorder %v573, inf
        %v598 = vsel %vm597, %v573, %v596
        %vm599 = vcmp.eq.f32.partialorder %v573, 0.0
        %v600 = vand.u32 %v573, 2147483648
        %v601 = vsel %vm599, %v600, %v598
        loop: start=0, step=1, limit=32
        $region79: #{principal_aggregate.1} parent=73 // loop_pre_header
          _
        $region80: #{principal_aggregate.1} parent=73 // loop_header
          %s603 = sphi 0, %s607
          %p604 = scmp.ge.s32.totalorder %s603, 32
          %v608 = vphi -1e+30, %v943
          %v609 = vphi -1e+30, %v944
          %v610 = vphi -1e+30, %v945
          %v611 = vphi -1e+30, %v946
          %v612 = vphi 1e+30, %v951
          %v613 = vphi 1e+30, %v952
          %v614 = vphi 1e+30, %v953
          %v615 = vphi 1e+30, %v954
        $region81: #{principal_aggregate.1} parent=73 // loop_header_branch
          %606 = sbr.rel (%p604) target = $region85
        $region82: #{principal_aggregate.1} parent=73 // loop_body
          %s616 = smul.u32 %s603, 8
          %s617 = scalar_lea.vmem %s357, %s616 [#allocation2]
          %v618 = vld [vmem:[%s617] sm:$0xff]
          %s619 = scalar_lea.vmem %s0, %s616
          %v620 = vld [vmem:[%s619] sm:$0xff]
          %621 = vxpose.xlu0.b32.start [1/16] %v620, 128
          %622 = vxpose.xlu0.b32.cont [2/16] 0.0, 128
          %623 = vxpose.xlu0.b32.cont [3/16] 0.0, 128
          %624 = vxpose.xlu0.b32.cont [4/16] 0.0, 128
          %625 = vxpose.xlu0.b32.cont [5/16] 0.0, 128
          %626 = vxpose.xlu0.b32.cont [6/16] 0.0, 128
          %627 = vxpose.xlu0.b32.cont [7/16] 0.0, 128
          %628 = vxpose.xlu0.b32.cont [8/16] 0.0, 128
          %629 = vxpose.xlu0.b32.cont [9/16] 0.0, 128
          %630 = vxpose.xlu0.b32.cont [10/16] 0.0, 128
          %631 = vxpose.xlu0.b32.cont [11/16] 0.0, 128
          %632 = vxpose.xlu0.b32.cont [12/16] 0.0, 128
          %633 = vxpose.xlu0.b32.cont [13/16] 0.0, 128
          %634 = vxpose.xlu0.b32.cont [14/16] 0.0, 128
          %635 = vxpose.xlu0.b32.cont [15/16] 0.0, 128
          %636 = vxpose.xlu0.b32.end [16/16] 0.0, 128
          %v637 = vpop.trf.xlu0
          %v638 = vpop.trf.xlu0
          %v639 = vpop.trf.xlu0
          %v640 = vpop.trf.xlu0
          %v641 = vpop.trf.xlu0
          %v642 = vpop.trf.xlu0
          %v643 = vpop.trf.xlu0
          %v644 = vpop.trf.xlu0
          %v645 = vpop.trf.xlu0
          %v646 = vpop.trf.xlu0
          %v647 = vpop.trf.xlu0
          %v648 = vpop.trf.xlu0
          %v649 = vpop.trf.xlu0
          %v650 = vpop.trf.xlu0
          %v651 = vpop.trf.xlu0
          %v652 = vpop.trf.xlu0
          %vm653 = vcmp.gt.f32.partialorder %v618, 0.0
          %655 = vset.pattern.permute.xlu0 0
          %656 = vperm.xlu0 %655, %v637
          %v657 = vpop.permute.xlu0 %656
          %660 = vset.pattern.permute.xlu0 0
          %661 = vperm.xlu0 %660, %v638
          %v662 = vpop.permute.xlu0 %661
          %665 = vset.pattern.permute.xlu0 0
          %666 = vperm.xlu0 %665, %v639
          %v667 = vpop.permute.xlu0 %666
          %670 = vset.pattern.permute.xlu0 0
          %671 = vperm.xlu0 %670, %v640
          %v672 = vpop.permute.xlu0 %671
          %v674 = vmax.f32 %v608, %v657
          %v675 = vmax.f32 %v609, %v662
          %v676 = vmax.f32 %v610, %v667
          %v677 = vmax.f32 %v611, %v672
          %v678 = vsel %vm653, 1, 0
          %v679 = vlaneseq
          %v680 = vshrl.u32 %v679, 7
          %v681 = vsub.s32 0, %v680
          %v682 = vrot.slane %v678, %v681
          %vm683 = vcmp.eq.s32.totalorder %v682, 1
          %v684 = vsel %vm683, %v674, %v608
          %v685 = vsel %vm683, %v675, %v609
          %v686 = vsel %vm683, %v676, %v610
          %v687 = vsel %vm683, %v677, %v611
          %v688 = vmin.f32 %v612, %v657
          %v689 = vmin.f32 %v613, %v662
          %v690 = vmin.f32 %v614, %v667
          %v691 = vmin.f32 %v615, %v672
          %v692 = vsel %vm683, %v688, %v612
          %v693 = vsel %vm683, %v689, %v613
          %v694 = vsel %vm683, %v690, %v614
          %v695 = vsel %vm683, %v691, %v615
          %696 = vset.pattern.permute.xlu0 1
          %697 = vperm.xlu0 %696, %v637
          %v698 = vpop.permute.xlu0 %697
          %700 = vset.pattern.permute.xlu0 1
          %701 = vperm.xlu0 %700, %v638
          %v702 = vpop.permute.xlu0 %701
          %704 = vset.pattern.permute.xlu0 1
          %705 = vperm.xlu0 %704, %v639
          %v706 = vpop.permute.xlu0 %705
          %708 = vset.pattern.permute.xlu0 1
          %709 = vperm.xlu0 %708, %v640
          %v710 = vpop.permute.xlu0 %709
          %v712 = vmax.f32 %v684, %v698
          %v713 = vmax.f32 %v685, %v702
          %v714 = vmax.f32 %v686, %v706
          %v715 = vmax.f32 %v687, %v710
          %v716 = vlaneseq
          %v717 = vshrl.u32 %v716, 7
          %v718 = vsub.s32 1, %v717
          %v719 = vrot.slane %v678, %v718
          %vm720 = vcmp.eq.s32.totalorder %v719, 1
          %v721 = vsel %vm720, %v712, %v684
          %v722 = vsel %vm720, %v713, %v685
          %v723 = vsel %vm720, %v714, %v686
          %v724 = vsel %vm720, %v715, %v687
          %v725 = vmin.f32 %v692, %v698
          %v726 = vmin.f32 %v693, %v702
          %v727 = vmin.f32 %v694, %v706
          %v728 = vmin.f32 %v695, %v710
          %v729 = vsel %vm720, %v725, %v692
          %v730 = vsel %vm720, %v726, %v693
          %v731 = vsel %vm720, %v727, %v694
          %v732 = vsel %vm720, %v728, %v695
          %733 = vset.pattern.permute.xlu0 2
          %734 = vperm.xlu0 %733, %v637
          %v735 = vpop.permute.xlu0 %734
          %737 = vset.pattern.permute.xlu0 2
          %738 = vperm.xlu0 %737, %v638
          %v739 = vpop.permute.xlu0 %738
          %741 = vset.pattern.permute.xlu0 2
          %742 = vperm.xlu0 %741, %v639
          %v743 = vpop.permute.xlu0 %742
          %745 = vset.pattern.permute.xlu0 2
          %746 = vperm.xlu0 %745, %v640
          %v747 = vpop.permute.xlu0 %746
          %v749 = vmax.f32 %v721, %v735
          %v750 = vmax.f32 %v722, %v739
          %v751 = vmax.f32 %v723, %v743
          %v752 = vmax.f32 %v724, %v747
          %v753 = vlaneseq
          %v754 = vshrl.u32 %v753, 7
          %v755 = vsub.s32 2, %v754
          %v756 = vrot.slane %v678, %v755
          %vm757 = vcmp.eq.s32.totalorder %v756, 1
          %v758 = vsel %vm757, %v749, %v721
          %v759 = vsel %vm757, %v750, %v722
          %v760 = vsel %vm757, %v751, %v723
          %v761 = vsel %vm757, %v752, %v724
          %v762 = vmin.f32 %v729, %v735
          %v763 = vmin.f32 %v730, %v739
          %v764 = vmin.f32 %v731, %v743
          %v765 = vmin.f32 %v732, %v747
          %v766 = vsel %vm757, %v762, %v729
          %v767 = vsel %vm757, %v763, %v730
          %v768 = vsel %vm757, %v764, %v731
          %v769 = vsel %vm757, %v765, %v732
          %770 = vset.pattern.permute.xlu0 3
          %771 = vperm.xlu0 %770, %v637
          %v772 = vpop.permute.xlu0 %771
          %774 = vset.pattern.permute.xlu0 3
          %775 = vperm.xlu0 %774, %v638
          %v776 = vpop.permute.xlu0 %775
          %778 = vset.pattern.permute.xlu0 3
          %779 = vperm.xlu0 %778, %v639
          %v780 = vpop.permute.xlu0 %779
          %782 = vset.pattern.permute.xlu0 3
          %783 = vperm.xlu0 %782, %v640
          %v784 = vpop.permute.xlu0 %783
          %v786 = vmax.f32 %v758, %v772
          %v787 = vmax.f32 %v759, %v776
          %v788 = vmax.f32 %v760, %v780
          %v789 = vmax.f32 %v761, %v784
          %v790 = vlaneseq
          %v791 = vshrl.u32 %v790, 7
          %v792 = vsub.s32 3, %v791
          %v793 = vrot.slane %v678, %v792
          %vm794 = vcmp.eq.s32.totalorder %v793, 1
          %v795 = vsel %vm794, %v786, %v758
          %v796 = vsel %vm794, %v787, %v759
          %v797 = vsel %vm794, %v788, %v760
          %v798 = vsel %vm794, %v789, %v761
          %v799 = vmin.f32 %v766, %v772
          %v800 = vmin.f32 %v767, %v776
          %v801 = vmin.f32 %v768, %v780
          %v802 = vmin.f32 %v769, %v784
          %v803 = vsel %vm794, %v799, %v766
          %v804 = vsel %vm794, %v800, %v767
          %v805 = vsel %vm794, %v801, %v768
          %v806 = vsel %vm794, %v802, %v769
          %807 = vset.pattern.permute.xlu0 4
          %808 = vperm.xlu0 %807, %v637
          %v809 = vpop.permute.xlu0 %808
          %811 = vset.pattern.permute.xlu0 4
          %812 = vperm.xlu0 %811, %v638
          %v813 = vpop.permute.xlu0 %812
          %815 = vset.pattern.permute.xlu0 4
          %816 = vperm.xlu0 %815, %v639
          %v817 = vpop.permute.xlu0 %816
          %819 = vset.pattern.permute.xlu0 4
          %820 = vperm.xlu0 %819, %v640
          %v821 = vpop.permute.xlu0 %820
          %v823 = vmax.f32 %v795, %v809
          %v824 = vmax.f32 %v796, %v813
          %v825 = vmax.f32 %v797, %v817
          %v826 = vmax.f32 %v798, %v821
          %v827 = vlaneseq
          %v828 = vshrl.u32 %v827, 7
          %v829 = vsub.s32 4, %v828
          %v830 = vrot.slane %v678, %v829
          %vm831 = vcmp.eq.s32.totalorder %v830, 1
          %v832 = vsel %vm831, %v823, %v795
          %v833 = vsel %vm831, %v824, %v796
          %v834 = vsel %vm831, %v825, %v797
          %v835 = vsel %vm831, %v826, %v798
          %v836 = vmin.f32 %v803, %v809
          %v837 = vmin.f32 %v804, %v813
          %v838 = vmin.f32 %v805, %v817
          %v839 = vmin.f32 %v806, %v821
          %v840 = vsel %vm831, %v836, %v803
          %v841 = vsel %vm831, %v837, %v804
          %v842 = vsel %vm831, %v838, %v805
          %v843 = vsel %vm831, %v839, %v806
          %844 = vset.pattern.permute.xlu0 5
          %845 = vperm.xlu0 %844, %v637
          %v846 = vpop.permute.xlu0 %845
          %848 = vset.pattern.permute.xlu0 5
          %849 = vperm.xlu0 %848, %v638
          %v850 = vpop.permute.xlu0 %849
          %852 = vset.pattern.permute.xlu0 5
          %853 = vperm.xlu0 %852, %v639
          %v854 = vpop.permute.xlu0 %853
          %856 = vset.pattern.permute.xlu0 5
          %857 = vperm.xlu0 %856, %v640
          %v858 = vpop.permute.xlu0 %857
          %v860 = vmax.f32 %v832, %v846
          %v861 = vmax.f32 %v833, %v850
          %v862 = vmax.f32 %v834, %v854
          %v863 = vmax.f32 %v835, %v858
          %v864 = vlaneseq
          %v865 = vshrl.u32 %v864, 7
          %v866 = vsub.s32 5, %v865
          %v867 = vrot.slane %v678, %v866
          %vm868 = vcmp.eq.s32.totalorder %v867, 1
          %v869 = vsel %vm868, %v860, %v832
          %v870 = vsel %vm868, %v861, %v833
          %v871 = vsel %vm868, %v862, %v834
          %v872 = vsel %vm868, %v863, %v835
          %v873 = vmin.f32 %v840, %v846
          %v874 = vmin.f32 %v841, %v850
          %v875 = vmin.f32 %v842, %v854
          %v876 = vmin.f32 %v843, %v858
          %v877 = vsel %vm868, %v873, %v840
          %v878 = vsel %vm868, %v874, %v841
          %v879 = vsel %vm868, %v875, %v842
          %v880 = vsel %vm868, %v876, %v843
          %881 = vset.pattern.permute.xlu0 6
          %882 = vperm.xlu0 %881, %v637
          %v883 = vpop.permute.xlu0 %882
          %885 = vset.pattern.permute.xlu0 6
          %886 = vperm.xlu0 %885, %v638
          %v887 = vpop.permute.xlu0 %886
          %889 = vset.pattern.permute.xlu0 6
          %890 = vperm.xlu0 %889, %v639
          %v891 = vpop.permute.xlu0 %890
          %893 = vset.pattern.permute.xlu0 6
          %894 = vperm.xlu0 %893, %v640
          %v895 = vpop.permute.xlu0 %894
          %v897 = vmax.f32 %v869, %v883
          %v898 = vmax.f32 %v870, %v887
          %v899 = vmax.f32 %v871, %v891
          %v900 = vmax.f32 %v872, %v895
          %v901 = vlaneseq
          %v902 = vshrl.u32 %v901, 7
          %v903 = vsub.s32 6, %v902
          %v904 = vrot.slane %v678, %v903
          %vm905 = vcmp.eq.s32.totalorder %v904, 1
          %v906 = vsel %vm905, %v897, %v869
          %v907 = vsel %vm905, %v898, %v870
          %v908 = vsel %vm905, %v899, %v871
          %v909 = vsel %vm905, %v900, %v872
          %v910 = vmin.f32 %v877, %v883
          %v911 = vmin.f32 %v878, %v887
          %v912 = vmin.f32 %v879, %v891
          %v913 = vmin.f32 %v880, %v895
          %v914 = vsel %vm905, %v910, %v877
          %v915 = vsel %vm905, %v911, %v878
          %v916 = vsel %vm905, %v912, %v879
          %v917 = vsel %vm905, %v913, %v880
          %918 = vset.pattern.permute.xlu0 7
          %919 = vperm.xlu0 %918, %v637
          %v920 = vpop.permute.xlu0 %919
          %922 = vset.pattern.permute.xlu0 7
          %923 = vperm.xlu0 %922, %v638
          %v924 = vpop.permute.xlu0 %923
          %926 = vset.pattern.permute.xlu0 7
          %927 = vperm.xlu0 %926, %v639
          %v928 = vpop.permute.xlu0 %927
          %930 = vset.pattern.permute.xlu0 7
          %931 = vperm.xlu0 %930, %v640
          %v932 = vpop.permute.xlu0 %931
          %v934 = vmax.f32 %v906, %v920
          %v935 = vmax.f32 %v907, %v924
          %v936 = vmax.f32 %v908, %v928
          %v937 = vmax.f32 %v909, %v932
          %v938 = vlaneseq
          %v939 = vshrl.u32 %v938, 7
          %v940 = vsub.s32 7, %v939
          %v941 = vrot.slane %v678, %v940
          %vm942 = vcmp.eq.s32.totalorder %v941, 1
          %v943 = vsel %vm942, %v934, %v906
          %v944 = vsel %vm942, %v935, %v907
          %v945 = vsel %vm942, %v936, %v908
          %v946 = vsel %vm942, %v937, %v909
          %v947 = vmin.f32 %v914, %v920
          %v948 = vmin.f32 %v915, %v924
          %v949 = vmin.f32 %v916, %v928
          %v950 = vmin.f32 %v917, %v932
          %v951 = vsel %vm942, %v947, %v914
          %v952 = vsel %vm942, %v948, %v915
          %v953 = vsel %vm942, %v949, %v916
          %v954 = vsel %vm942, %v950, %v917
        $region83: #{principal_aggregate.1} parent=73 // loop_footer
          %s607 = sadd.s32 1, %s603
        $region84: #{principal_aggregate.1} parent=73 // loop_footer_branch
          %602 = sbr.rel target = $region80
        $region85: #{principal_aggregate.1} parent=73 // loop_exit
          _
        %v955 = vsel %vm542, 1, 0
        %v956 = vlaneseq
        %v957 = vshrl.u32 %v956, 7
        %v958 = vsub.s32 0, %v957
        %v959 = vrot.slane %v955, %v958
        %vm960 = vcmp.eq.s32.totalorder %v959, 1
        %v961 = vsel %vm960, %v608, 0.0
        %v962 = vsel %vm960, %v609, 0.0
        %v963 = vsel %vm960, %v610, 0.0
        %v964 = vsel %vm960, %v611, 0.0
        %v965 = vsel %vm960, %v612, 0.0
        %v966 = vsel %vm960, %v613, 0.0
        %v967 = vsel %vm960, %v614, 0.0
        %v968 = vsel %vm960, %v615, 0.0
        %v969 = vld [vmem:[%s3] sm:$0xff]
        %v970 = vld [vmem:[%s3 + $0x8] sm:$0xff]
        %v971 = vld [vmem:[%s3 + $0x10] sm:$0xff]
        %v972 = vld [vmem:[%s3 + $0x18] sm:$0xff]
        %v973 = vld [vmem:[%s4] sm:$0xff]
        %v974 = vld [vmem:[%s4 + $0x8] sm:$0xff]
        %v975 = vld [vmem:[%s4 + $0x10] sm:$0xff]
        %v976 = vld [vmem:[%s4 + $0x18] sm:$0xff]
        %978 = vset.pattern.permute.xlu0 0
        %979 = vperm.xlu0 %978, %v973
        %v980 = vpop.permute.xlu0 %979
        %983 = vset.pattern.permute.xlu0 0
        %984 = vperm.xlu0 %983, %v974
        %v985 = vpop.permute.xlu0 %984
        %988 = vset.pattern.permute.xlu0 0
        %989 = vperm.xlu0 %988, %v975
        %v990 = vpop.permute.xlu0 %989
        %993 = vset.pattern.permute.xlu0 0
        %994 = vperm.xlu0 %993, %v976
        %v995 = vpop.permute.xlu0 %994
        %997 = vmatprep.subr.mxu0 0.0
        %998 = vmatpush1.msra.mxu0 %v601
        %999 = vmatprep.subr.mxu0 0.0
        %1000 = vmatpush1.msra.mxu0 %v594
        %1001 = vmatprep.subr.mxu0 0.0
        %1002 = vmatpush1.msra.mxu0 %v587
        %1003 = vmatprep.subr.mxu0 0.0
        %1004 = vmatpush1.msra.mxu0 %v580
        %1005 = vmatprep.subr.mxu0 0.0
        %1006 = vmatpush1.msra.mxu0 %v968
        %1007 = vmatprep.subr.mxu0 0.0
        %1008 = vmatpush1.msra.mxu0 %v967
        %1009 = vmatprep.subr.mxu0 0.0
        %1010 = vmatpush1.msra.mxu0 %v966
        %1011 = vmatprep.subr.mxu0 0.0
        %1012 = vmatpush1.msra.mxu0 %v965
        %1013 = vmatprep.subr.mxu0 0.0
        %1014 = vmatpush1.msra.mxu0 %v964
        %1015 = vmatprep.subr.mxu0 0.0
        %1016 = vmatpush1.msra.mxu0 %v963
        %1017 = vmatprep.subr.mxu0 0.0
        %1018 = vmatpush1.msra.mxu0 %v962
        %1019 = vmatprep.subr.mxu0 0.0
        %1020 = vmatpush1.msra.mxu0 %v961
        %1021 = vmatprep.subr.mxu0 0.0
        %1022 = vmatpush1.msra.mxu0 %v553
        %1023 = vmatprep.subr.mxu0 0.0
        %1024 = vmatpush1.msra.mxu0 %v552
        %1025 = vmatprep.subr.mxu0 0.0
        %1026 = vmatpush1.msra.mxu0 %v551
        %1027 = vmatprep.subr.mxu0 0.0
        %1028 = vmatpush1.msra.mxu0 %v550
        %1029 = vmatprep.subr.mxu0 0.0
        %1030 = vmatpush2.msra.mxu0 0.0
        %1031 = vmatprep.subr.mxu0 0.0
        %1032 = vmatpush2.msra.mxu0 0.0
        %1033 = vmatprep.subr.mxu0 0.0
        %1034 = vmatpush2.msra.mxu0 0.0
        %1035 = vmatprep.subr.mxu0 0.0
        %1036 = vmatpush2.msra.mxu0 0.0
        %1037 = vmatprep.subr.mxu0 0.0
        %1038 = vmatpush2.msra.mxu0 0.0
        %1039 = vmatprep.subr.mxu0 0.0
        %1040 = vmatpush2.msra.mxu0 0.0
        %1041 = vmatprep.subr.mxu0 0.0
        %1042 = vmatpush2.msra.mxu0 0.0
        %1043 = vmatprep.subr.mxu0 0.0
        %1044 = vmatpush2.msra.mxu0 0.0
        %1045 = vmatprep.subr.mxu0 0.0
        %1046 = vmatpush2.msra.mxu0 0.0
        %1047 = vmatprep.subr.mxu0 0.0
        %1048 = vmatpush2.msra.mxu0 0.0
        %1049 = vmatprep.subr.mxu0 0.0
        %1050 = vmatpush2.msra.mxu0 0.0
        %1051 = vmatprep.subr.mxu0 0.0
        %1052 = vmatpush2.msra.mxu0 0.0
        %1053 = vmatprep.subr.mxu0 0.0
        %1054 = vmatpush2.msra.mxu0 0.0
        %1055 = vmatprep.subr.mxu0 0.0
        %1056 = vmatpush2.msra.mxu0 0.0
        %1057 = vmatprep.subr.mxu0 0.0
        %1058 = vmatpush2.msra.mxu0 0.0
        %1059 = vmatprep.subr.mxu0 0.0
        %1060 = vmatpush2.msra.mxu0 0.0
        %1061 = vmatprep.mubr.f32.mxu0 0.0
        %1062 = vmatmul.mubr.f32.gmra.mxu0 %v969
        %v1063 = vpop.f32.mrf.mxu0
        %v1064 = vadd.f32 %v980, %v1063
        %v1065 = vpop.f32.mrf.mxu0
        %1066 = vmatprep.mubr.f32.mxu0 0.0
        %1067 = vmatmul.mubr.f32.gmra.mxu0 %v970
        %v1068 = vpop.f32.mrf.mxu0
        %v1069 = vadd.f32 %v985, %v1068
        %v1070 = vpop.f32.mrf.mxu0
        %1071 = vmatprep.mubr.f32.mxu0 0.0
        %1072 = vmatmul.mubr.f32.gmra.mxu0 %v971
        %v1073 = vpop.f32.mrf.mxu0
        %v1074 = vadd.f32 %v990, %v1073
        %v1075 = vpop.f32.mrf.mxu0
        %1076 = vmatprep.mubr.f32.mxu0 0.0
        %1077 = vmatmul.mubr.f32.gmra.mxu0 %v972
        %v1078 = vpop.f32.mrf.mxu0
        %v1079 = vadd.f32 %v995, %v1078
        %v1080 = vpop.f32.mrf.mxu0
        %1081 = vdwg.mxu0
        %v1082 = vmax.f32 %v1064, 0.0
        %v1083 = vmax.f32 %v1069, 0.0
        %v1084 = vmax.f32 %v1074, 0.0
        %v1085 = vmax.f32 %v1079, 0.0
        %1086 = vst [vmem:[%s381] sm:$0xff] %v1082
        %1087 = vst [vmem:[%s381 + $0x8] sm:$0xff] %v1083
        %1088 = vst [vmem:[%s381 + $0x10] sm:$0xff] %v1084
        %1089 = vst [vmem:[%s381 + $0x18] sm:$0xff] %v1085
        %s1090 = sand.u32 %s137, 1
        %s1091 = scalar_lea.sflag [#allocation4], %s1090
        %s1092 = sand.u32 %s137, 1
        %s1093 = smul.addr %s1092, 32
        %s1094 = scalar_lea.vmem [#allocation3], %s1093
        // Predicated region
        $region86: #{principal_aggregate.1} parent=73 // pred_check
          %p1095 = pneg %p147
        $region87: #{principal_aggregate.1} parent=73 // pred_check_branch
          %1097 = sbr.rel (%p1095) target = $region89
        $region88: #{principal_aggregate.1} parent=73 // pred_region
          %s1099 = ssub.s32 512, 512
          %1100 = vsyncadd %s1091, %s1099
          %s1101 = smul.addr %s19, 128
          %s1102 = scalar_lea.hbm %s5, %s1101
          %s1103 = sshll.u32 %s1094, 4
          %s1104 = int_to_ptr.vmem [resolvable:$true] %s1103
          %1109 = dma.vmem_to_hbm [thread:$0]  %s1104, 512, %s1102, %s1091, 128, 256, 8
        $region89: #{principal_aggregate.1} parent=73 // pred_fallthru
          _
      $region74: #{principal_aggregate.1} parent=5 // pred_fallthru
        _
      %p1110 = scmp.le.s32.totalorder 2, %s14
      // Predicated region
      $region90: #{principal_aggregate.1} parent=5 // pred_check
        %p1111 = pneg %p1110
      $region91: #{principal_aggregate.1} parent=5 // pred_check_branch
        %1113 = sbr.rel (%p1111) target = $region93
      $region92: #{principal_aggregate.1} parent=5 // pred_region
        %s1114 = ssub.s32 %s14, 2
        // Predicated region
        $region94: #{principal_aggregate.1} parent=92 // pred_check
          %p1115 = pneg %p153
        $region95: #{principal_aggregate.1} parent=92 // pred_check_branch
          %1117 = sbr.rel (%p1115) target = $region97
        $region96: #{principal_aggregate.1} parent=92 // pred_region
          %s1118 = sand.u32 %s138, 1
          %s1119 = scalar_lea.sflag [#allocation4], %s1118
          %s1120 = sand.u32 %s138, 1
          %s1121 = smul.addr %s1120, 32
          %s1122 = scalar_lea.vmem [#allocation3], %s1121
          %1123 = dma.done %s1119, 512
        $region97: #{principal_aggregate.1} parent=92 // pred_fallthru
          _
      $region93: #{principal_aggregate.1} parent=5 // pred_fallthru
        _
    $region6: #{principal_aggregate.1} parent=1 // loop_footer
      %s18 = sadd.s32 1, %s14
    $region7: #{principal_aggregate.1} parent=1 // loop_footer_branch
      %13 = sbr.rel target = $region3
    $region8: #{principal_aggregate.1} parent=1 // loop_exit
      _
    %1124 = vsyncpa [#allocation4], 1
    %s1125 = scalar_lea.sflag [#allocation4], 1
    %1126 = vsyncpa %s1125, 1

</llo_original>
